<compile_context>
chip_gen: v6e
topology: v6e:2x2x1
jax: 0.10.0
libtpu: 0.0.40
codegen_flags: <defaults>
</compile_context>

<pallas_src>
import functools

import jax
import jax.numpy as jnp
from jax.experimental import pallas as pl
from jax.experimental.pallas import tpu as pltpu


def _round_up(x, m):
    return (x + m - 1) // m * m


def _cdiv(a, b):
    return (a + b - 1) // b


def _aux_kernel(x_ref, wc_ref, bc_ref, wf_ref, bf_ref, out_ref,
                pool_ref, h_ref, *, C, L, TC, TL, mask_c, mask_l):
    """Grid = (B tiles, C tiles, L tiles); C and L are trailing reduction axes."""
    c = pl.program_id(1)
    l = pl.program_id(2)
    nc = pl.num_programs(1)
    nl = pl.num_programs(2)

    @pl.when(jnp.logical_and(c == 0, l == 0))
    def _():
        h_ref[...] = jnp.zeros_like(h_ref)

    @pl.when(l == 0)
    def _():
        pool_ref[...] = jnp.zeros_like(pool_ref)

    # Pooling sum over this (C, L) tile; L is on lanes so this is a cheap XLU
    # cross-lane reduce that overlaps with the (dominant) x DMA.
    xblk = x_ref[...].astype(jnp.float32)                       # (TB, TC, TL)
    if mask_c or mask_l:                                        # ragged edges only
        valid = None
        if mask_c:
            ci = jax.lax.broadcasted_iota(jnp.int32, (TC, TL), 0)
            valid = (c * TC + ci) < C
        if mask_l:
            li = jax.lax.broadcasted_iota(jnp.int32, (TC, TL), 1)
            lv = (l * TL + li) < L
            valid = lv if valid is None else jnp.logical_and(valid, lv)
        xblk = jnp.where(valid[None, :, :], xblk, 0.0)
    pool_ref[...] += jnp.sum(xblk, axis=-1)                     # (TB, TC)

    @pl.when(l == nl - 1)
    def _():
        # Channel-tile contribution to the hidden layer.  BN(eval) scale and
        # 1/L are already folded into wc; the BN bias is added in the epilogue.
        h_ref[...] += jnp.dot(pool_ref[...], wc_ref[...],
                              preferred_element_type=jnp.float32)

    @pl.when(jnp.logical_and(c == nc - 1, l == nl - 1))
    def _():
        h = jnp.maximum(h_ref[...] + bc_ref[...], 0.0)          # BN bias + ReLU
        out_ref[...] = (jnp.dot(h, wf_ref[...],
                                preferred_element_type=jnp.float32)
                        + bf_ref[...]).astype(out_ref.dtype)


def auxiliary_classifier(x, conv_w, bn_gamma, bn_beta, bn_rm, bn_rv, fc_w, fc_b,
                         *, eps=1e-5):
    """x: (B, in_ch, L), read in its native layout/dtype (pass bf16 x for half
    the HBM traffic).  conv_w: (out_ch, in_ch, 3).  fc_w: (num_classes, out_ch)."""
    B, C, L = x.shape
    O = conv_w.shape[0]
    NC = fc_w.shape[0]
    itemsize = jnp.dtype(x.dtype).itemsize

    # ---- constant folding: BN(eval) scale + 1/L into the conv middle tap ----
    scale = bn_gamma.astype(jnp.float32) * jax.lax.rsqrt(bn_rv.astype(jnp.float32) + eps)
    w_conv = conv_w[:, :, 1].astype(jnp.float32).T * (scale[None, :] / float(L))  # (C, O)
    b_conv = bn_beta.astype(jnp.float32) - bn_rm.astype(jnp.float32) * scale       # (O,)
    w_fc = fc_w.astype(jnp.float32).T                                              # (O, NC)
    b_fc = fc_b.astype(jnp.float32)                                                 # (NC,)

    # ---- per-generation VMEM budgets ----------------------------------------
    try:
        vmem_cap = int(pltpu.get_tpu_info().vmem_capacity_bytes)
    except Exception:
        vmem_cap = 64 << 20                       # conservative (v7x-sized) fallback
    if vmem_cap >= (96 << 20):                    # v5e / v6e: 128 MiB physical VMEM
        x_budget, vmem_cap_limit = 16 << 20, 96 << 20
    else:                                         # v7x: 64 MiB physical VMEM
        x_budget, vmem_cap_limit = 8 << 20, 40 << 20

    # ---- batch tiling: >=2 parallel blocks whenever B > 8 (v7x megacore) ----
    if B > 8:
        nb = max(2, _cdiv(B, 128))
        TB = _round_up(_cdiv(B, nb), 8)           # padded batch rows < 8 per block
    else:
        nb, TB = 1, B                             # full-dim block (no padding)
    Bp = nb * TB

    # ---- (C, L) tiling of native-layout x: largest tile within budget -------
    cap_elems = max(1, x_budget // (TB * itemsize))
    if C * L <= cap_elems:
        TC, TL = C, L                             # whole (C, L) plane per B tile
    else:
        if L >= 128:
            TL = min(max((cap_elems // C // 128) * 128, 128), (L // 128) * 128)
        else:
            TL = L
        max_tc = max((cap_elems // TL // 8) * 8, 8)
        TC = C if max_tc >= C else max_tc
    nc = _cdiv(C, TC)
    nl = _cdiv(L, TL)
    mask_c = (C % TC) != 0
    mask_l = (L % TL) != 0
    Cg = nc * TC                                  # channel extent covered by the grid

    # ---- lane-pad the (tiny) weights so matmuls / output store are dense ----
    Op = _round_up(O, 128)
    NCp = _round_up(NC, 128)
    wc = jnp.pad(w_conv, ((0, Cg - C), (0, Op - O)))
    bc = jnp.pad(b_conv, (0, Op - O)).reshape(1, Op)
    wf = jnp.pad(w_fc, ((0, Op - O), (0, NCp - NC)))
    bf = jnp.pad(b_fc, (0, NCp - NC)).reshape(1, NCp)

    # ---- explicit VMEM budget (double-buffered x + resident weights/out) ----
    x_bytes = TB * TC * TL * itemsize
    w_bytes = (Cg * Op + Op + Op * NCp + NCp) * 4
    io_bytes = TB * NCp * 4
    scratch_bytes = (TB * TC + TB * Op) * 4
    vmem_bytes = 2 * x_bytes + 2 * w_bytes + 2 * io_bytes + scratch_bytes + (4 << 20)
    vmem_bytes = int(min(max(vmem_bytes, 16 << 20), vmem_cap_limit))

    kernel = functools.partial(_aux_kernel, C=C, L=L, TC=TC, TL=TL,
                               mask_c=mask_c, mask_l=mask_l)

    out_padded = pl.pallas_call(
        kernel,
        out_shape=jax.ShapeDtypeStruct((Bp, NCp), jnp.float32),
        grid_spec=pltpu.PrefetchScalarGridSpec(
            num_scalar_prefetch=0,
            grid=(nb, nc, nl),
            in_specs=[
                pl.BlockSpec((TB, TC, TL), lambda i, c, l: (i, c, l)),  # x (native layout, pipelined)
                pl.BlockSpec((TC, Op), lambda i, c, l: (c, 0)),         # conv weight (BN+1/L folded)
                pl.BlockSpec((1, Op), lambda i, c, l: (0, 0)),          # folded BN bias
                pl.BlockSpec((Op, NCp), lambda i, c, l: (0, 0)),        # fc weight
                pl.BlockSpec((1, NCp), lambda i, c, l: (0, 0)),         # fc bias
            ],
            out_specs=pl.BlockSpec((TB, NCp), lambda i, c, l: (i, 0)),
            scratch_shapes=[pltpu.VMEM((TB, TC), jnp.float32),          # pooled-sum accumulator
                            pltpu.VMEM((TB, Op), jnp.float32)],         # hidden accumulator
        ),
        compiler_params=pltpu.CompilerParams(
            dimension_semantics=("parallel", "arbitrary", "arbitrary"),
            vmem_limit_bytes=vmem_bytes,
        ),
    )(x, wc, bc, wf, bf)

    return out_padded[:B, :NC]


def reference_forward(x, conv_w, bn_gamma, bn_beta, bn_rm, bn_rv, fc_w, fc_b, eps=1e-5):
    pooled = jnp.mean(x, axis=-1)                                        # (B, C)
    h = pooled @ conv_w[:, :, 1].T                                       # (B, O)  (k=3,pad=1 on len-1)
    h = (h - bn_rm) / jnp.sqrt(bn_rv + eps) * bn_gamma + bn_beta         # BN eval
    h = jnp.maximum(h, 0.0)                                              # ReLU (x2 idempotent)
    return h @ fc_w.T + fc_b                                             # (B, NC)


if __name__ == "__main__":
    B, in_ch, L = 2, 4, 16
    out_ch, num_classes = 8, 6

    key = jax.random.PRNGKey(0)
    kx, kc, kg, kb, krm, krv, kw, kbias = jax.random.split(key, 8)

    x = jax.random.normal(kx, (B, in_ch, L), dtype=jnp.float32)
    conv_w = jax.random.normal(kc, (out_ch, in_ch, 3), dtype=jnp.float32) * 0.1
    bn_gamma = 1.0 + 0.1 * jax.random.normal(kg, (out_ch,), dtype=jnp.float32)
    bn_beta = 0.1 * jax.random.normal(kb, (out_ch,), dtype=jnp.float32)
    bn_rm = 0.1 * jax.random.normal(krm, (out_ch,), dtype=jnp.float32)
    bn_rv = 1.0 + 0.1 * jax.random.uniform(krv, (out_ch,), dtype=jnp.float32)
    fc_w = jax.random.normal(kw, (num_classes, out_ch), dtype=jnp.float32) * 0.1
    fc_b = 0.1 * jax.random.normal(kbias, (num_classes,), dtype=jnp.float32)

    ref = reference_forward(x, conv_w, bn_gamma, bn_beta, bn_rm, bn_rv, fc_w, fc_b)

    # f32 x (exact path)
    out = auxiliary_classifier(x, conv_w, bn_gamma, bn_beta, bn_rm, bn_rv, fc_w, fc_b)
    out = jax.block_until_ready(out)
    assert out.shape == (B, num_classes)
    assert jnp.allclose(out, ref, atol=1e-4, rtol=1e-4), "f32 mismatch vs reference"

    # bf16 x transport (caller stores x in bf16 -> half the HBM traffic); looser tolerance.
    out_bf16 = auxiliary_classifier(x.astype(jnp.bfloat16), conv_w, bn_gamma, bn_beta,
                                    bn_rm, bn_rv, fc_w, fc_b)
    out_bf16 = jax.block_until_ready(out_bf16)
    assert jnp.allclose(out_bf16, ref, atol=5e-2, rtol=5e-2), "bf16 mismatch vs reference"

    print("KERNEL_OK")
</pallas_src>

<mosaic_0001>
module attributes {stable_mosaic.version = 11 : i64} {
  func.func @_aux_kernel(%arg0: i32, %arg1: i32, %arg2: i32, %arg3: memref<2x4x16xf32, #tpu.memory_space<vmem>>, %arg4: memref<4x128xf32, #tpu.memory_space<vmem>>, %arg5: memref<1x128xf32, #tpu.memory_space<vmem>>, %arg6: memref<128x128xf32, #tpu.memory_space<vmem>>, %arg7: memref<1x128xf32, #tpu.memory_space<vmem>>, %arg8: memref<2x128xf32, #tpu.memory_space<vmem>>, %arg9: memref<2x4xf32, #tpu.memory_space<vmem>>, %arg10: memref<2x128xf32, #tpu.memory_space<vmem>>) attributes {dimension_semantics = [#tpu.dimension_semantics<parallel>, #tpu.dimension_semantics<arbitrary>, #tpu.dimension_semantics<arbitrary>], iteration_bounds = array<i64: 1, 1, 1>, scalar_prefetch = 0 : i64, scratch_operands = 2 : i64, tpu.core_type = #tpu.core_type<tc>, window_params = [{transform_indices = @transform_0, window_bounds = array<i64: 2, 4, 16>}, {transform_indices = @transform_1, window_bounds = array<i64: 4, 128>}, {pipeline_mode = #tpu.pipeline_mode<synchronous>, transform_indices = @transform_2, window_bounds = array<i64: 1, 128>}, {pipeline_mode = #tpu.pipeline_mode<synchronous>, transform_indices = @transform_3, window_bounds = array<i64: 128, 128>}, {pipeline_mode = #tpu.pipeline_mode<synchronous>, transform_indices = @transform_4, window_bounds = array<i64: 1, 128>}, {transform_indices = @transform_5, window_bounds = array<i64: 2, 128>}]} {
    %c0_i32 = arith.constant 0 : i32
    %0 = arith.cmpi eq, %arg1, %c0_i32 : i32
    %c0_i32_0 = arith.constant 0 : i32
    %1 = arith.cmpi eq, %arg2, %c0_i32_0 : i32
    %2 = arith.andi %0, %1 : i1
    %3 = arith.extui %2 : i1 to i32
    %c0_i32_1 = arith.constant 0 : i32
    %4 = arith.cmpi ne, %3, %c0_i32_1 : i32
    scf.if %4 {
      %cst_15 = arith.constant 0.000000e+00 : f32
      %21 = vector.broadcast %cst_15 : f32 to vector<2x128xf32>
      %c0_16 = arith.constant 0 : index
      %c0_17 = arith.constant 0 : index
      %22 = vector.load %arg10[%c0_16, %c0_17] : memref<2x128xf32, #tpu.memory_space<vmem>>, vector<2x128xf32>
      tpu.vector_store %arg10[%c0_16, %c0_17], %21 {strides = array<i32>} : memref<2x128xf32, #tpu.memory_space<vmem>>, vector<2x128xf32>,
    } else {
    }
    %c0_i32_2 = arith.constant 0 : i32
    %5 = arith.cmpi eq, %arg2, %c0_i32_2 : i32
    %6 = arith.extui %5 : i1 to i32
    %c0_i32_3 = arith.constant 0 : i32
    %7 = arith.cmpi ne, %6, %c0_i32_3 : i32
    scf.if %7 {
      %cst_15 = arith.constant 0.000000e+00 : f32
      %21 = vector.broadcast %cst_15 : f32 to vector<2x4xf32>
      %c0_16 = arith.constant 0 : index
      %c0_17 = arith.constant 0 : index
      %22 = vector.load %arg9[%c0_16, %c0_17] : memref<2x4xf32, #tpu.memory_space<vmem>>, vector<2x4xf32>
      tpu.vector_store %arg9[%c0_16, %c0_17], %21 {strides = array<i32>} : memref<2x4xf32, #tpu.memory_space<vmem>>, vector<2x4xf32>,
    } else {
    }
    %c0 = arith.constant 0 : index
    %c0_4 = arith.constant 0 : index
    %c0_5 = arith.constant 0 : index
    %8 = vector.load %arg3[%c0, %c0_4, %c0_5] : memref<2x4x16xf32, #tpu.memory_space<vmem>>, vector<2x4x16xf32>
    %c0_6 = arith.constant 0 : index
    %c0_7 = arith.constant 0 : index
    %9 = vector.load %arg9[%c0_6, %c0_7] : memref<2x4xf32, #tpu.memory_space<vmem>>, vector<2x4xf32>
    %cst = arith.constant dense<0.000000e+00> : vector<2x4xf32>
    %10 = vector.multi_reduction <add>, %8, %cst [2] : vector<2x4x16xf32> to vector<2x4xf32>
    %11 = arith.addf %9, %10 : vector<2x4xf32>
    %c0_8 = arith.constant 0 : index
    %c0_9 = arith.constant 0 : index
    %12 = vector.load %arg9[%c0_8, %c0_9] : memref<2x4xf32, #tpu.memory_space<vmem>>, vector<2x4xf32>
    tpu.vector_store %arg9[%c0_8, %c0_9], %11 {strides = array<i32>} : memref<2x4xf32, #tpu.memory_space<vmem>>, vector<2x4xf32>,
    %c0_i32_10 = arith.constant 0 : i32
    %13 = arith.cmpi eq, %arg2, %c0_i32_10 : i32
    %14 = arith.extui %13 : i1 to i32
    %c0_i32_11 = arith.constant 0 : i32
    %15 = arith.cmpi ne, %14, %c0_i32_11 : i32
    scf.if %15 {
      %c0_15 = arith.constant 0 : index
      %c0_16 = arith.constant 0 : index
      %21 = vector.load %arg10[%c0_15, %c0_16] : memref<2x128xf32, #tpu.memory_space<vmem>>, vector<2x128xf32>
      %c0_17 = arith.constant 0 : index
      %c0_18 = arith.constant 0 : index
      %22 = vector.load %arg9[%c0_17, %c0_18] : memref<2x4xf32, #tpu.memory_space<vmem>>, vector<2x4xf32>
      %c0_19 = arith.constant 0 : index
      %c0_20 = arith.constant 0 : index
      %23 = vector.load %arg4[%c0_19, %c0_20] : memref<4x128xf32, #tpu.memory_space<vmem>>, vector<4x128xf32>
      %cst_21 = arith.constant dense<0.000000e+00> : vector<2x128xf32>
      %24 = tpu.matmul %22, %23, %cst_21 {dimension_numbers = #tpu.dot_dimension_numbers<[1], [0], [0], [1], [0, 0, 1, 1], [], []>} : vector<2x4xf32>, vector<4x128xf32>, vector<2x128xf32> -> vector<2x128xf32>
      %25 = arith.addf %21, %24 : vector<2x128xf32>
      %c0_22 = arith.constant 0 : index
      %c0_23 = arith.constant 0 : index
      %26 = vector.load %arg10[%c0_22, %c0_23] : memref<2x128xf32, #tpu.memory_space<vmem>>, vector<2x128xf32>
      tpu.vector_store %arg10[%c0_22, %c0_23], %25 {strides = array<i32>} : memref<2x128xf32, #tpu.memory_space<vmem>>, vector<2x128xf32>,
    } else {
    }
    %c0_i32_12 = arith.constant 0 : i32
    %16 = arith.cmpi eq, %arg1, %c0_i32_12 : i32
    %c0_i32_13 = arith.constant 0 : i32
    %17 = arith.cmpi eq, %arg2, %c0_i32_13 : i32
    %18 = arith.andi %16, %17 : i1
    %19 = arith.extui %18 : i1 to i32
    %c0_i32_14 = arith.constant 0 : i32
    %20 = arith.cmpi ne, %19, %c0_i32_14 : i32
    scf.if %20 {
      %c0_15 = arith.constant 0 : index
      %c0_16 = arith.constant 0 : index
      %21 = vector.load %arg10[%c0_15, %c0_16] : memref<2x128xf32, #tpu.memory_space<vmem>>, vector<2x128xf32>
      %c0_17 = arith.constant 0 : index
      %c0_18 = arith.constant 0 : index
      %22 = vector.load %arg5[%c0_17, %c0_18] : memref<1x128xf32, #tpu.memory_space<vmem>>, vector<1x128xf32>
      %23 = vector.broadcast %22 : vector<1x128xf32> to vector<2x128xf32>
      %24 = arith.addf %21, %23 : vector<2x128xf32>
      %cst_19 = arith.constant 0.000000e+00 : f32
      %25 = vector.broadcast %cst_19 : f32 to vector<2x128xf32>
      %26 = arith.maximumf %24, %25 : vector<2x128xf32>
      %c0_20 = arith.constant 0 : index
      %c0_21 = arith.constant 0 : index
      %27 = vector.load %arg6[%c0_20, %c0_21] : memref<128x128xf32, #tpu.memory_space<vmem>>, vector<128x128xf32>
      %cst_22 = arith.constant dense<0.000000e+00> : vector<2x128xf32>
      %28 = tpu.matmul %26, %27, %cst_22 {dimension_numbers = #tpu.dot_dimension_numbers<[1], [0], [0], [1], [0, 0, 1, 1], [], []>} : vector<2x128xf32>, vector<128x128xf32>, vector<2x128xf32> -> vector<2x128xf32>
      %c0_23 = arith.constant 0 : index
      %c0_24 = arith.constant 0 : index
      %29 = vector.load %arg7[%c0_23, %c0_24] : memref<1x128xf32, #tpu.memory_space<vmem>>, vector<1x128xf32>
      %30 = vector.broadcast %29 : vector<1x128xf32> to vector<2x128xf32>
      %31 = arith.addf %28, %30 : vector<2x128xf32>
      %c0_25 = arith.constant 0 : index
      %c0_26 = arith.constant 0 : index
      %32 = vector.load %arg8[%c0_25, %c0_26] : memref<2x128xf32, #tpu.memory_space<vmem>>, vector<2x128xf32>
      tpu.vector_store %arg8[%c0_25, %c0_26], %31 {strides = array<i32>} : memref<2x128xf32, #tpu.memory_space<vmem>>, vector<2x128xf32>,
    } else {
    }
    return
  }
  func.func @transform_0(%arg0: i32, %arg1: i32, %arg2: i32) -> (i32, i32, i32) {
    %c0_i32 = arith.constant 0 : i32
    return %arg0, %arg1, %arg2 : i32, i32, i32
  }
  func.func @transform_1(%arg0: i32, %arg1: i32, %arg2: i32) -> (i32, i32) {
    %c0_i32 = arith.constant 0 : i32
    %c0_i32_0 = arith.constant 0 : i32
    return %arg1, %c0_i32 : i32, i32
  }
  func.func @transform_2(%arg0: i32, %arg1: i32, %arg2: i32) -> (i32, i32) {
    %c0_i32 = arith.constant 0 : i32
    %c0_i32_0 = arith.constant 0 : i32
    %c0_i32_1 = arith.constant 0 : i32
    return %c0_i32, %c0_i32_0 : i32, i32
  }
  func.func @transform_3(%arg0: i32, %arg1: i32, %arg2: i32) -> (i32, i32) {
    %c0_i32 = arith.constant 0 : i32
    %c0_i32_0 = arith.constant 0 : i32
    %c0_i32_1 = arith.constant 0 : i32
    return %c0_i32, %c0_i32_0 : i32, i32
  }
  func.func @transform_4(%arg0: i32, %arg1: i32, %arg2: i32) -> (i32, i32) {
    %c0_i32 = arith.constant 0 : i32
    %c0_i32_0 = arith.constant 0 : i32
    %c0_i32_1 = arith.constant 0 : i32
    return %c0_i32, %c0_i32_0 : i32, i32
  }
  func.func @transform_5(%arg0: i32, %arg1: i32, %arg2: i32) -> (i32, i32) {
    %c0_i32 = arith.constant 0 : i32
    %c0_i32_0 = arith.constant 0 : i32
    return %arg0, %c0_i32 : i32, i32
  }
}

</mosaic_0001>

<llo_original>
// kernel: tpu_custom_call.1
$region0: #{tpu_custom_call.1}
  #allocation0 [shape = 'u32[]', space=smem, size = 0x4, offset = 0x4, fixed_abs, tag = 'smem constant byte address 0x4 - core index']
  #allocation1 [shape = 'u32[144,128]{1,0:T(1,128)}', space=vmem, size = 0x12000, scoped, tag = 'internal scratch']
  #allocation2 [shape = 'f32[2,4]{1,0:T(2,128)}', space=vmem, size = 0x400, scoped, tag = 'scratch operand']
  #allocation3 [shape = 'f32[2,128]{1,0:T(2,128)}', space=vmem, size = 0x400, scoped, tag = 'scratch operand']
  %s0 = inlined_call_operand.hbm [shape: f32[2,4,16], index: 0, kind: input, shape index: {}]
  %s1 = inlined_call_operand.hbm [shape: f32[4,128], index: 1, kind: input, shape index: {}]
  %s2 = inlined_call_operand.vmem [shape: f32[1,128], index: 2, kind: input, shape index: {}]
  %s3 = inlined_call_operand.hbm [shape: f32[128,128], index: 3, kind: input, shape index: {}]
  %s4 = inlined_call_operand.vmem [shape: f32[1,128], index: 4, kind: input, shape index: {}]
  %s5 = inlined_call_operand.hbm [shape: f32[2,128], index: 5, kind: output, shape index: {}]
  %s6 = sld [smem:[#allocation0]]
  $region58: #{tpu_custom_call.1} parent=0
    _
  %s8 = ssub.s32 1, %s6
  %s9 = scalar_select 0, %s8, %s6
  $region1: #{tpu_custom_call.1} parent=0
    #allocation4 [shape = 'u8[4096]{0}', space=vmem, size = 0x1000, scoped, tag = 'input window, operand 0, single buffered']
    #allocation5 [shape = 's32[1]{0}', space=sflag, size = 0x4, scoped, tag = 'scoped memory for tpu_custom_call.1']
    #allocation6 [shape = 's32[1]{0}', space=sflag, size = 0x4, scoped, tag = 'scoped memory for tpu_custom_call.1']
    #allocation7 [shape = 'u8[2048]{0}', space=vmem, size = 0x800, scoped, tag = 'input window, operand 1, single buffered']
    #allocation8 [shape = 's32[1]{0}', space=sflag, size = 0x4, scoped, tag = 'scoped memory for tpu_custom_call.1']
    #allocation9 [shape = 'u8[65536]{0}', space=vmem, size = 0x10000, scoped, tag = 'input window, operand 3, single buffered']
    #allocation10 [shape = 'u8[1024]{0}', space=vmem, size = 0x400, scoped, tag = 'output window, operand 0, single buffered']
    %10 = vsyncpa [#allocation5], 0
    %11 = vsyncpa [#allocation8], 0
    %12 = vsyncpa [#allocation6], 0
    // Predicated region
    $region2: #{tpu_custom_call.1} parent=1 // pred_check
      _
    $region3: #{tpu_custom_call.1} parent=1 // pred_check_branch
      %14 = sbr.rel (0) target = $region5
    $region4: #{tpu_custom_call.1} parent=1 // pred_region
      %s16 = ssub.s32 128, 128
      %17 = vsyncadd [#allocation5], %s16
      %s18 = sshll.u32 [#allocation4], 4
      %s19 = int_to_ptr.vmem [resolvable:$true] %s18
      %24 = dma.hbm_to_vmem [thread:$0]  %s0, 128, %s19, [#allocation5], 64, 64, 4
    $region5: #{tpu_custom_call.1} parent=1 // pred_fallthru
      _
    // Predicated region
    $region6: #{tpu_custom_call.1} parent=1 // pred_check
      _
    $region7: #{tpu_custom_call.1} parent=1 // pred_check_branch
      %26 = sbr.rel (0) target = $region9
    $region8: #{tpu_custom_call.1} parent=1 // pred_region
      %s28 = ssub.s32 64, 64
      %29 = vsyncadd [#allocation8], %s28
      %s31 = sshll.u32 [#allocation7], 4
      %s32 = int_to_ptr.vmem [resolvable:$true] %s31
      %34 = dma.hbm_to_vmem [thread:$0]  %s1, 64, %s32, [#allocation8]
    $region9: #{tpu_custom_call.1} parent=1 // pred_fallthru
      _
    // Predicated region
    $region10: #{tpu_custom_call.1} parent=1 // pred_check
      _
    $region11: #{tpu_custom_call.1} parent=1 // pred_check_branch
      %36 = sbr.rel (0) target = $region13
    $region12: #{tpu_custom_call.1} parent=1 // pred_region
      _
    $region13: #{tpu_custom_call.1} parent=1 // pred_fallthru
      _
    // Predicated region
    $region14: #{tpu_custom_call.1} parent=1 // pred_check
      _
    $region15: #{tpu_custom_call.1} parent=1 // pred_check_branch
      %38 = sbr.rel (0) target = $region17
    $region16: #{tpu_custom_call.1} parent=1 // pred_region
      %s40 = ssub.s32 2048, 2048
      %41 = vsyncadd [#allocation8], %s40
      %s42 = sshll.u32 [#allocation9], 4
      %s43 = int_to_ptr.vmem [resolvable:$true] %s42
      %48 = dma.hbm_to_vmem [thread:$0]  %s3, 2048, %s43, [#allocation8], 128, 128, 8
    $region17: #{tpu_custom_call.1} parent=1 // pred_fallthru
      _
    // Predicated region
    $region18: #{tpu_custom_call.1} parent=1 // pred_check
      _
    $region19: #{tpu_custom_call.1} parent=1 // pred_check_branch
      %50 = sbr.rel (0) target = $region21
    $region20: #{tpu_custom_call.1} parent=1 // pred_region
      _
    $region21: #{tpu_custom_call.1} parent=1 // pred_fallthru
      _
    // Predicated region
    $region22: #{tpu_custom_call.1} parent=1 // pred_check
      _
    $region23: #{tpu_custom_call.1} parent=1 // pred_check_branch
      %52 = sbr.rel (0) target = $region25
    $region24: #{tpu_custom_call.1} parent=1 // pred_region
      %53 = dma.done [#allocation5], 128
    $region25: #{tpu_custom_call.1} parent=1 // pred_fallthru
      _
    // Predicated region
    $region26: #{tpu_custom_call.1} parent=1 // pred_check
      _
    $region27: #{tpu_custom_call.1} parent=1 // pred_check_branch
      %55 = sbr.rel (0) target = $region29
    $region28: #{tpu_custom_call.1} parent=1 // pred_region
      %56 = dma.done [#allocation8], 64
    $region29: #{tpu_custom_call.1} parent=1 // pred_fallthru
      _
    // Predicated region
    $region30: #{tpu_custom_call.1} parent=1 // pred_check
      _
    $region31: #{tpu_custom_call.1} parent=1 // pred_check_branch
      %58 = sbr.rel (0) target = $region33
    $region32: #{tpu_custom_call.1} parent=1 // pred_region
      %59 = dma.done [#allocation8], 2048
    $region33: #{tpu_custom_call.1} parent=1 // pred_fallthru
      _
    %p60 = scmp.eq.s32.totalorder 0, 0
    %p61 = scmp.eq.s32.totalorder 0, 0
    %p62 = pnand %p60, %p61
    %p63 = pneg %p62
    // Predicated region
    $region34: #{tpu_custom_call.1} parent=1 // pred_check
      _
    $region35: #{tpu_custom_call.1} parent=1 // pred_check_branch
      %65 = sbr.rel (%p62) target = $region37
    $region36: #{tpu_custom_call.1} parent=1 // pred_region
      %66 = vst [vmem:[#allocation3] sm:$0x3] 0.0
    $region37: #{tpu_custom_call.1} parent=1 // pred_fallthru
      _
    // Predicated region
    $region38: #{tpu_custom_call.1} parent=1 // pred_check
      %p67 = pneg %p61
    $region39: #{tpu_custom_call.1} parent=1 // pred_check_branch
      %69 = sbr.rel (%p67) target = $region41
    $region40: #{tpu_custom_call.1} parent=1 // pred_region
      %vm70 = vcmask 25600
      %71 = vst.msk [vmem:[#allocation2] sm:$0x3] %vm70, 0.0
    $region41: #{tpu_custom_call.1} parent=1 // pred_fallthru
      _
    %v72 = vld [vmem:[#allocation4] sm:$0xf]
    %v73 = vld [vmem:[#allocation4 + $0x4] sm:$0xf]
    %v74 = vld [vmem:[#allocation2] sm:$0x3]
    %vm75 = vcmask 125952
    %v76 = vsel %vm75, %v72, 0.0
    %77 = vadd.xlane.f32.xlu0 %v76
    %v78 = vpop.xlane.xlu0 %77
    %v79 = vsel %vm75, %v73, 0.0
    %80 = vadd.xlane.f32.xlu0 %v79
    %v81 = vpop.xlane.xlu0 %80
    %v84 = vlaneseq
    %v85 = vand.u32 %v84, 127
    %v86 = vlaneseq
    %v87 = vshrl.u32 %v86, 7
    %v88 = vsub.s32 %v85, %v87
    %v89 = vrot.slane %v78, %v88
    %v90 = vlaneseq
    %v91 = vshrl.u32 %v90, 7
    %v92 = vsub.s32 %v85, %v91
    %v93 = vrot.slane %v81, %v92
    %vm94 = vcmask 1041409
    %v95 = vsel %vm94, %v93, %v89
    %v97 = vadd.f32 %v74, %v95
    %vm98 = vcmask 25600
    %99 = vst.msk [vmem:[#allocation2] sm:$0x3] %vm98, %v97
    // Predicated region
    $region42: #{tpu_custom_call.1} parent=1 // pred_check
      %p100 = pneg %p61
    $region43: #{tpu_custom_call.1} parent=1 // pred_check_branch
      %102 = sbr.rel (%p100) target = $region45
    $region44: #{tpu_custom_call.1} parent=1 // pred_region
      %v103 = vld [vmem:[#allocation3] sm:$0x3]
      %v104 = vld [vmem:[#allocation2] sm:$0x3]
      %v105 = vld [vmem:[#allocation7] sm:$0xf]
      %vm106 = vcmask 31744
      %v108 = vsel %vm106, %v104, 0
      %vm110 = vcmask 1043456
      %v112 = vsel %vm110, %v105, 0
      %114 = vmatprep.subr.mxu0 0.0
      %115 = vmatpush1.msra.mxu0 0.0
      %116 = vmatprep.subr.mxu0 0.0
      %117 = vmatpush1.msra.mxu0 0.0
      %118 = vmatprep.subr.mxu0 0.0
      %119 = vmatpush1.msra.mxu0 0.0
      %120 = vmatprep.subr.mxu0 0.0
      %121 = vmatpush1.msra.mxu0 0.0
      %122 = vmatprep.subr.mxu0 0.0
      %123 = vmatpush1.msra.mxu0 0.0
      %124 = vmatprep.subr.mxu0 0.0
      %125 = vmatpush1.msra.mxu0 0.0
      %126 = vmatprep.subr.mxu0 0.0
      %127 = vmatpush1.msra.mxu0 0.0
      %128 = vmatprep.subr.mxu0 0.0
      %129 = vmatpush1.msra.mxu0 0.0
      %130 = vmatprep.subr.mxu0 0.0
      %131 = vmatpush1.msra.mxu0 0.0
      %132 = vmatprep.subr.mxu0 0.0
      %133 = vmatpush1.msra.mxu0 0.0
      %134 = vmatprep.subr.mxu0 0.0
      %135 = vmatpush1.msra.mxu0 0.0
      %136 = vmatprep.subr.mxu0 0.0
      %137 = vmatpush1.msra.mxu0 0.0
      %138 = vmatprep.subr.mxu0 0.0
      %139 = vmatpush1.msra.mxu0 0.0
      %140 = vmatprep.subr.mxu0 0.0
      %141 = vmatpush1.msra.mxu0 0.0
      %142 = vmatprep.subr.mxu0 0.0
      %143 = vmatpush1.msra.mxu0 0.0
      %144 = vmatprep.subr.mxu0 0.0
      %145 = vmatpush1.msra.mxu0 %v112
      %146 = vmatprep.subr.mxu0 0.0
      %147 = vmatpush2.msra.mxu0 0.0
      %148 = vmatprep.subr.mxu0 0.0
      %149 = vmatpush2.msra.mxu0 0.0
      %150 = vmatprep.subr.mxu0 0.0
      %151 = vmatpush2.msra.mxu0 0.0
      %152 = vmatprep.subr.mxu0 0.0
      %153 = vmatpush2.msra.mxu0 0.0
      %154 = vmatprep.subr.mxu0 0.0
      %155 = vmatpush2.msra.mxu0 0.0
      %156 = vmatprep.subr.mxu0 0.0
      %157 = vmatpush2.msra.mxu0 0.0
      %158 = vmatprep.subr.mxu0 0.0
      %159 = vmatpush2.msra.mxu0 0.0
      %160 = vmatprep.subr.mxu0 0.0
      %161 = vmatpush2.msra.mxu0 0.0
      %162 = vmatprep.subr.mxu0 0.0
      %163 = vmatpush2.msra.mxu0 0.0
      %164 = vmatprep.subr.mxu0 0.0
      %165 = vmatpush2.msra.mxu0 0.0
      %166 = vmatprep.subr.mxu0 0.0
      %167 = vmatpush2.msra.mxu0 0.0
      %168 = vmatprep.subr.mxu0 0.0
      %169 = vmatpush2.msra.mxu0 0.0
      %170 = vmatprep.subr.mxu0 0.0
      %171 = vmatpush2.msra.mxu0 0.0
      %172 = vmatprep.subr.mxu0 0.0
      %173 = vmatpush2.msra.mxu0 0.0
      %174 = vmatprep.subr.mxu0 0.0
      %175 = vmatpush2.msra.mxu0 0.0
      %176 = vmatprep.subr.mxu0 0.0
      %177 = vmatpush2.msra.mxu0 0.0
      %178 = vmatprep.mubr.f32.mxu0 0.0
      %179 = vmatmul.mubr.f32.gmra.mxu0 %v108
      %v180 = vpop.f32.mrf.mxu0
      %v181 = vadd.f32 0.0, %v180
      %v182 = vpop.f32.mrf.mxu0
      %183 = vdwg.mxu0
      %v184 = vadd.f32 %v103, %v181
      %185 = vst [vmem:[#allocation3] sm:$0x3] %v184
    $region45: #{tpu_custom_call.1} parent=1 // pred_fallthru
      _
    // Predicated region
    $region46: #{tpu_custom_call.1} parent=1 // pred_check
      _
    $region47: #{tpu_custom_call.1} parent=1 // pred_check_branch
      %187 = sbr.rel (%p62) target = $region49
    $region48: #{tpu_custom_call.1} parent=1 // pred_region
      %v188 = vld [vmem:[#allocation3] sm:$0x3]
      %v189 = vld [vmem:[%s2] sm:$0x1]
      %v191 = vlaneseq
      %v192 = vshrl.u32 %v191, 7
      %v193 = vsub.s32 0, %v192
      %v194 = vrot.slane %v189, %v193
      %v196 = vadd.f32 %v188, %v194
      %v197 = vmax.f32 %v196, 0.0
      %v198 = vld [vmem:[#allocation9] sm:$0xff]
      %v199 = vld [vmem:[#allocation9 + $0x8] sm:$0xff]
      %v200 = vld [vmem:[#allocation9 + $0x10] sm:$0xff]
      %v201 = vld [vmem:[#allocation9 + $0x18] sm:$0xff]
      %v202 = vld [vmem:[#allocation9 + $0x20] sm:$0xff]
      %v203 = vld [vmem:[#allocation9 + $0x28] sm:$0xff]
      %v204 = vld [vmem:[#allocation9 + $0x30] sm:$0xff]
      %v205 = vld [vmem:[#allocation9 + $0x38] sm:$0xff]
      %v206 = vld [vmem:[#allocation9 + $0x40] sm:$0xff]
      %v207 = vld [vmem:[#allocation9 + $0x48] sm:$0xff]
      %v208 = vld [vmem:[#allocation9 + $0x50] sm:$0xff]
      %v209 = vld [vmem:[#allocation9 + $0x58] sm:$0xff]
      %v210 = vld [vmem:[#allocation9 + $0x60] sm:$0xff]
      %v211 = vld [vmem:[#allocation9 + $0x68] sm:$0xff]
      %v212 = vld [vmem:[#allocation9 + $0x70] sm:$0xff]
      %v213 = vld [vmem:[#allocation9 + $0x78] sm:$0xff]
      %v214 = vld [vmem:[%s4] sm:$0x1]
      %v216 = vlaneseq
      %v217 = vshrl.u32 %v216, 7
      %v218 = vsub.s32 0, %v217
      %v219 = vrot.slane %v214, %v218
      %221 = vmatprep.subr.mxu0 0.0
      %222 = vmatpush1.msra.mxu0 %v213
      %223 = vmatprep.subr.mxu0 0.0
      %224 = vmatpush1.msra.mxu0 %v212
      %225 = vmatprep.subr.mxu0 0.0
      %226 = vmatpush1.msra.mxu0 %v211
      %227 = vmatprep.subr.mxu0 0.0
      %228 = vmatpush1.msra.mxu0 %v210
      %229 = vmatprep.subr.mxu0 0.0
      %230 = vmatpush1.msra.mxu0 %v209
      %231 = vmatprep.subr.mxu0 0.0
      %232 = vmatpush1.msra.mxu0 %v208
      %233 = vmatprep.subr.mxu0 0.0
      %234 = vmatpush1.msra.mxu0 %v207
      %235 = vmatprep.subr.mxu0 0.0
      %236 = vmatpush1.msra.mxu0 %v206
      %237 = vmatprep.subr.mxu0 0.0
      %238 = vmatpush1.msra.mxu0 %v205
      %239 = vmatprep.subr.mxu0 0.0
      %240 = vmatpush1.msra.mxu0 %v204
      %241 = vmatprep.subr.mxu0 0.0
      %242 = vmatpush1.msra.mxu0 %v203
      %243 = vmatprep.subr.mxu0 0.0
      %244 = vmatpush1.msra.mxu0 %v202
      %245 = vmatprep.subr.mxu0 0.0
      %246 = vmatpush1.msra.mxu0 %v201
      %247 = vmatprep.subr.mxu0 0.0
      %248 = vmatpush1.msra.mxu0 %v200
      %249 = vmatprep.subr.mxu0 0.0
      %250 = vmatpush1.msra.mxu0 %v199
      %251 = vmatprep.subr.mxu0 0.0
      %252 = vmatpush1.msra.mxu0 %v198
      %253 = vmatprep.subr.mxu0 0.0
      %254 = vmatpush2.msra.mxu0 0.0
      %255 = vmatprep.subr.mxu0 0.0
      %256 = vmatpush2.msra.mxu0 0.0
      %257 = vmatprep.subr.mxu0 0.0
      %258 = vmatpush2.msra.mxu0 0.0
      %259 = vmatprep.subr.mxu0 0.0
      %260 = vmatpush2.msra.mxu0 0.0
      %261 = vmatprep.subr.mxu0 0.0
      %262 = vmatpush2.msra.mxu0 0.0
      %263 = vmatprep.subr.mxu0 0.0
      %264 = vmatpush2.msra.mxu0 0.0
      %265 = vmatprep.subr.mxu0 0.0
      %266 = vmatpush2.msra.mxu0 0.0
      %267 = vmatprep.subr.mxu0 0.0
      %268 = vmatpush2.msra.mxu0 0.0
      %269 = vmatprep.subr.mxu0 0.0
      %270 = vmatpush2.msra.mxu0 0.0
      %271 = vmatprep.subr.mxu0 0.0
      %272 = vmatpush2.msra.mxu0 0.0
      %273 = vmatprep.subr.mxu0 0.0
      %274 = vmatpush2.msra.mxu0 0.0
      %275 = vmatprep.subr.mxu0 0.0
      %276 = vmatpush2.msra.mxu0 0.0
      %277 = vmatprep.subr.mxu0 0.0
      %278 = vmatpush2.msra.mxu0 0.0
      %279 = vmatprep.subr.mxu0 0.0
      %280 = vmatpush2.msra.mxu0 0.0
      %281 = vmatprep.subr.mxu0 0.0
      %282 = vmatpush2.msra.mxu0 0.0
      %283 = vmatprep.subr.mxu0 0.0
      %284 = vmatpush2.msra.mxu0 0.0
      %285 = vmatprep.mubr.f32.mxu0 0.0
      %286 = vmatmul.mubr.f32.gmra.mxu0 %v197
      %v287 = vpop.f32.mrf.mxu0
      %v288 = vadd.f32 %v219, %v287
      %v289 = vpop.f32.mrf.mxu0
      %290 = vdwg.mxu0
      %291 = vst [vmem:[#allocation10] sm:$0x3] %v288
    $region49: #{tpu_custom_call.1} parent=1 // pred_fallthru
      _
    // Predicated region
    $region50: #{tpu_custom_call.1} parent=1 // pred_check
      _
    $region51: #{tpu_custom_call.1} parent=1 // pred_check_branch
      %293 = sbr.rel (0) target = $region53
    $region52: #{tpu_custom_call.1} parent=1 // pred_region
      %s295 = ssub.s32 32, 32
      %296 = vsyncadd [#allocation6], %s295
      %s298 = sshll.u32 [#allocation10], 4
      %s299 = int_to_ptr.vmem [resolvable:$true] %s298
      %301 = dma.vmem_to_hbm [thread:$0]  %s299, 32, %s5, [#allocation6]
    $region53: #{tpu_custom_call.1} parent=1 // pred_fallthru
      _
    // Predicated region
    $region54: #{tpu_custom_call.1} parent=1 // pred_check
      _
    $region55: #{tpu_custom_call.1} parent=1 // pred_check_branch
      %303 = sbr.rel (0) target = $region57
    $region56: #{tpu_custom_call.1} parent=1 // pred_region
      %304 = dma.done [#allocation6], 32
    $region57: #{tpu_custom_call.1} parent=1 // pred_fallthru
      _
    %305 = vsyncpa [#allocation5], 1
    %306 = vsyncpa [#allocation8], 1
    %307 = vsyncpa [#allocation6], 1

</llo_original>
